<compile_context>
chip_gen: v6e
topology: v6e:2x2x1
jax: 0.10.0
libtpu: 0.0.40
codegen_flags: <defaults>
</compile_context>

<pallas_src>
import jax
import jax.numpy as jnp
from jax.experimental import pallas as pl
from jax.experimental.pallas import tpu as pltpu


def _mlp_kernel(x_ref, w1_ref, b1_ref, w2_ref, b2_ref,
                w3_ref, b3_ref, w4_ref, b4_ref, o_ref):
    # In-kernel bf16 cast: x crosses HBM once as f32, cast is a free VPU op.
    x = x_ref[...].astype(jnp.bfloat16)
    # fc1: bf16 MXU matmul, f32 accumulate; bias-add + ReLU in f32 (VPU).
    h = jnp.dot(x, w1_ref[...], preferred_element_type=jnp.float32)
    h = jnp.maximum(h + b1_ref[...], 0.0)
    # drop1: identity (inference)  # TODO(synk): training-mode dropout not implemented
    # fc2
    h = jnp.dot(h.astype(jnp.bfloat16), w2_ref[...],
                preferred_element_type=jnp.float32)
    h = jnp.maximum(h + b2_ref[...], 0.0)
    # drop2: identity (inference)
    # fc3 (output columns padded 64 -> 128 with zero weights/bias: full-lane
    # vregs, bit-identical values).
    h = jnp.dot(h.astype(jnp.bfloat16), w3_ref[...],
                preferred_element_type=jnp.float32)
    h = jnp.maximum(h + b3_ref[...], 0.0)
    # out (no activation): only the real 2 output columns are computed/stored.
    y = jnp.dot(h.astype(jnp.bfloat16), w4_ref[...],
                preferred_element_type=jnp.float32) + b4_ref[...]
    o_ref[...] = y.astype(o_ref.dtype)


def _round_up(n, m):
    return ((n + m - 1) // m) * m


def _vmem_block_cap(d_in, budget_bytes=20 * 1024 * 1024):
    # Rough per-row VMEM footprint of one grid step: double-buffered f32 x tile,
    # in-kernel bf16 copy of x, f32 + bf16 copies of each hidden activation, and
    # the double-buffered f32 output tile.  Budget stays well under the 32 MiB
    # scoped limit requested below (v7x physical VMEM is only 64 MiB).
    per_row = (d_in * 4 * 2 + d_in * 2
               + (256 + 128 + 128) * (4 + 2)
               + 2 * 4 * 2)
    cap = budget_bytes // max(per_row, 1)
    return int(max(128, min(2048, (cap // 128) * 128)))


def _choose_block_b(B, d_in):
    cap = _vmem_block_cap(d_in)
    if B <= 512:
        # Latency regime: a single fat tile, no per-step pipeline overhead.
        return min(_round_up(B, 8), cap)
    # Throughput regime: aim for an even number of >= 4 grid steps (v7x has
    # 2 TensorCores; each wants >= 2 steps to pipeline DMA against compute)
    # with tiles as fat as the VMEM budget allows (~0.35 us fixed cost/step).
    block = _round_up(-(-B // 4), 8)
    return min(block, cap)


def prepare_params(params):
    """One-time cast/pad of (in, out)-layout Linear params for the kernel.

    Call once and reuse: keeps the cast/pad XLA fusions out of the per-call
    path (matters in the small-batch latency regime).
    """
    (w1, b1), (w2, b2), (w3, b3), (w4, b4) = params
    h3 = w3.shape[1]                       # 64
    h3_pad = _round_up(h3, 128)            # 128: full-lane fc3 activations
    w3p = jnp.pad(w3, ((0, 0), (0, h3_pad - h3)))
    b3p = jnp.pad(b3, (0, h3_pad - h3))
    w4p = jnp.pad(w4, ((0, h3_pad - h3), (0, 0)))
    return (w1.astype(jnp.bfloat16), b1.reshape(1, -1).astype(jnp.float32),
            w2.astype(jnp.bfloat16), b2.reshape(1, -1).astype(jnp.float32),
            w3p.astype(jnp.bfloat16), b3p.reshape(1, -1).astype(jnp.float32),
            w4p.astype(jnp.bfloat16), b4.reshape(1, -1).astype(jnp.float32))


def ann_model_forward(x, prepped, *, block_b=None):
    """Fused 4-layer MLP forward. x: (B, input_size) f32 -> (B, 2) f32."""
    w1b, b1r, w2b, b2r, w3b, b3r, w4b, b4r = prepped
    B, D_in = x.shape
    out_dim = w4b.shape[1]                 # 2

    if block_b is None:
        block_b = _choose_block_b(B, D_in)
    block_b = max(8, _round_up(int(block_b), 8))   # (8,128) sublane constraint

    n_blocks = -(-B // block_b)
    if n_blocks > 1 and n_blocks % 2:
        n_blocks += 1                      # even grid: v7x 2-TC load balance
    B_pad = n_blocks * block_b

    xb = x.astype(jnp.float32)
    if B_pad != B:
        xb = jnp.pad(xb, ((0, B_pad - B), (0, 0)))

    def const_spec(shape):
        # Whole-array block with a constant index_map: fetched once, reused by
        # every grid step (weights ~110 KiB total in bf16 -> trivial VMEM).
        return pl.BlockSpec(shape, lambda i: (0,) * len(shape))

    y = pl.pallas_call(
        _mlp_kernel,
        out_shape=jax.ShapeDtypeStruct((B_pad, out_dim), jnp.float32),
        grid_spec=pltpu.PrefetchScalarGridSpec(
            num_scalar_prefetch=0,
            grid=(n_blocks,),
            in_specs=[
                pl.BlockSpec((block_b, D_in), lambda i: (i, 0)),   # x tile
                const_spec(w1b.shape), const_spec(b1r.shape),
                const_spec(w2b.shape), const_spec(b2r.shape),
                const_spec(w3b.shape), const_spec(b3r.shape),
                const_spec(w4b.shape), const_spec(b4r.shape),
            ],
            # Last dim (2) equals the full array dim -> legal block; only the
            # real output columns are written back (8 B/row of HBM traffic).
            out_specs=pl.BlockSpec((block_b, out_dim), lambda i: (i, 0)),
        ),
        compiler_params=pltpu.CompilerParams(
            dimension_semantics=("parallel",),
            vmem_limit_bytes=32 * 1024 * 1024),
    )(xb, w1b, b1r, w2b, b2r, w3b, b3r, w4b, b4r)

    return y[:B, :]


def init_params(key, input_size):
    """Deterministic init mirroring nn.Linear shapes (stored as (in, out))."""
    dims = [(input_size, 256), (256, 128), (128, 64), (64, 2)]
    params = []
    for fan_in, fan_out in dims:
        kw, kb, key = jax.random.split(key, 3)
        bound = 1.0 / jnp.sqrt(fan_in)
        w = jax.random.uniform(kw, (fan_in, fan_out), jnp.float32, -bound, bound)
        b = jax.random.uniform(kb, (fan_out,), jnp.float32, -bound, bound)
        params.append((w, b))
    return params


def reference_forward(x, params):
    """Pure-JAX reference with the same bf16-matmul / f32-accumulate scheme."""
    h = x
    for i, (w, b) in enumerate(params):
        h = jnp.dot(h.astype(jnp.bfloat16), w.astype(jnp.bfloat16),
                    preferred_element_type=jnp.float32) + b
        if i < 3:
            h = jnp.maximum(h, 0.0)
    return h


if __name__ == "__main__":
    key = jax.random.PRNGKey(0)
    kx, kp, kx2 = jax.random.split(key, 3)

    input_size = 32
    params = init_params(kp, input_size)
    prepped = prepare_params(params)        # one-time cast/pad, off hot path
    fwd = jax.jit(ann_model_forward)

    # Case 1: tiny batch (latency regime; single tile, single grid step).
    batch = 8
    x = jax.random.normal(kx, (batch, input_size), jnp.float32)
    out = jax.block_until_ready(fwd(x, prepped))
    ref = reference_forward(x, params)
    assert out.shape == (batch, 2), out.shape
    assert jnp.allclose(out, ref, atol=2e-3, rtol=2e-3), (
        float(jnp.max(jnp.abs(out - ref))))

    # Case 2: ragged batch exercising the multi-step grid (4 even steps of
    # block_b=256, padded last block) and the narrow (block_b, 2) output store.
    batch2 = 1000
    x2 = jax.random.normal(kx2, (batch2, input_size), jnp.float32)
    out2 = jax.block_until_ready(fwd(x2, prepped))
    ref2 = reference_forward(x2, params)
    assert out2.shape == (batch2, 2), out2.shape
    assert jnp.allclose(out2, ref2, atol=2e-3, rtol=2e-3), (
        float(jnp.max(jnp.abs(out2 - ref2))))

    print("KERNEL_OK")
</pallas_src>

<mosaic_0001>
module attributes {stable_mosaic.version = 11 : i64} {
  func.func @_mlp_kernel(%arg0: i32, %arg1: memref<8x32xf32, #tpu.memory_space<vmem>>, %arg2: memref<32x256xbf16, #tpu.memory_space<vmem>>, %arg3: memref<1x256xf32, #tpu.memory_space<vmem>>, %arg4: memref<256x128xbf16, #tpu.memory_space<vmem>>, %arg5: memref<1x128xf32, #tpu.memory_space<vmem>>, %arg6: memref<128x128xbf16, #tpu.memory_space<vmem>>, %arg7: memref<1x128xf32, #tpu.memory_space<vmem>>, %arg8: memref<128x2xbf16, #tpu.memory_space<vmem>>, %arg9: memref<1x2xf32, #tpu.memory_space<vmem>>, %arg10: memref<8x2xf32, #tpu.memory_space<vmem>>) attributes {dimension_semantics = [#tpu.dimension_semantics<parallel>], iteration_bounds = array<i64: 1>, scalar_prefetch = 0 : i64, scratch_operands = 0 : i64, tpu.core_type = #tpu.core_type<tc>, window_params = [{transform_indices = @transform_0, window_bounds = array<i64: 8, 32>}, {pipeline_mode = #tpu.pipeline_mode<synchronous>, transform_indices = @transform_1, window_bounds = array<i64: 32, 256>}, {pipeline_mode = #tpu.pipeline_mode<synchronous>, transform_indices = @transform_2, window_bounds = array<i64: 1, 256>}, {pipeline_mode = #tpu.pipeline_mode<synchronous>, transform_indices = @transform_3, window_bounds = array<i64: 256, 128>}, {pipeline_mode = #tpu.pipeline_mode<synchronous>, transform_indices = @transform_4, window_bounds = array<i64: 1, 128>}, {pipeline_mode = #tpu.pipeline_mode<synchronous>, transform_indices = @transform_5, window_bounds = array<i64: 128, 128>}, {pipeline_mode = #tpu.pipeline_mode<synchronous>, transform_indices = @transform_6, window_bounds = array<i64: 1, 128>}, {pipeline_mode = #tpu.pipeline_mode<synchronous>, transform_indices = @transform_7, window_bounds = array<i64: 128, 2>}, {pipeline_mode = #tpu.pipeline_mode<synchronous>, transform_indices = @transform_8, window_bounds = array<i64: 1, 2>}, {transform_indices = @transform_9, window_bounds = array<i64: 8, 2>}]} {
    %c0 = arith.constant 0 : index
    %c0_0 = arith.constant 0 : index
    %0 = vector.load %arg1[%c0, %c0_0] : memref<8x32xf32, #tpu.memory_space<vmem>>, vector<8x32xf32>
    %1 = arith.truncf %0 : vector<8x32xf32> to vector<8x32xbf16>
    %c0_1 = arith.constant 0 : index
    %c0_2 = arith.constant 0 : index
    %2 = vector.load %arg2[%c0_1, %c0_2] : memref<32x256xbf16, #tpu.memory_space<vmem>>, vector<32x256xbf16>
    %cst = arith.constant dense<0.000000e+00> : vector<8x256xf32>
    %3 = tpu.matmul %1, %2, %cst {dimension_numbers = #tpu.dot_dimension_numbers<[1], [0], [0], [1], [0, 0, 1, 1], [], []>} : vector<8x32xbf16>, vector<32x256xbf16>, vector<8x256xf32> -> vector<8x256xf32>
    %c0_3 = arith.constant 0 : index
    %c0_4 = arith.constant 0 : index
    %4 = vector.load %arg3[%c0_3, %c0_4] : memref<1x256xf32, #tpu.memory_space<vmem>>, vector<1x256xf32>
    %5 = vector.broadcast %4 : vector<1x256xf32> to vector<8x256xf32>
    %6 = arith.addf %3, %5 : vector<8x256xf32>
    %cst_5 = arith.constant 0.000000e+00 : f32
    %7 = vector.broadcast %cst_5 : f32 to vector<8x256xf32>
    %8 = arith.maximumf %6, %7 : vector<8x256xf32>
    %9 = arith.truncf %8 : vector<8x256xf32> to vector<8x256xbf16>
    %c0_6 = arith.constant 0 : index
    %c0_7 = arith.constant 0 : index
    %10 = vector.load %arg4[%c0_6, %c0_7] : memref<256x128xbf16, #tpu.memory_space<vmem>>, vector<256x128xbf16>
    %cst_8 = arith.constant dense<0.000000e+00> : vector<8x128xf32>
    %11 = tpu.matmul %9, %10, %cst_8 {dimension_numbers = #tpu.dot_dimension_numbers<[1], [0], [0], [1], [0, 0, 1, 1], [], []>} : vector<8x256xbf16>, vector<256x128xbf16>, vector<8x128xf32> -> vector<8x128xf32>
    %c0_9 = arith.constant 0 : index
    %c0_10 = arith.constant 0 : index
    %12 = vector.load %arg5[%c0_9, %c0_10] : memref<1x128xf32, #tpu.memory_space<vmem>>, vector<1x128xf32>
    %13 = vector.broadcast %12 : vector<1x128xf32> to vector<8x128xf32>
    %14 = arith.addf %11, %13 : vector<8x128xf32>
    %cst_11 = arith.constant 0.000000e+00 : f32
    %15 = vector.broadcast %cst_11 : f32 to vector<8x128xf32>
    %16 = arith.maximumf %14, %15 : vector<8x128xf32>
    %17 = arith.truncf %16 : vector<8x128xf32> to vector<8x128xbf16>
    %c0_12 = arith.constant 0 : index
    %c0_13 = arith.constant 0 : index
    %18 = vector.load %arg6[%c0_12, %c0_13] : memref<128x128xbf16, #tpu.memory_space<vmem>>, vector<128x128xbf16>
    %cst_14 = arith.constant dense<0.000000e+00> : vector<8x128xf32>
    %19 = tpu.matmul %17, %18, %cst_14 {dimension_numbers = #tpu.dot_dimension_numbers<[1], [0], [0], [1], [0, 0, 1, 1], [], []>} : vector<8x128xbf16>, vector<128x128xbf16>, vector<8x128xf32> -> vector<8x128xf32>
    %c0_15 = arith.constant 0 : index
    %c0_16 = arith.constant 0 : index
    %20 = vector.load %arg7[%c0_15, %c0_16] : memref<1x128xf32, #tpu.memory_space<vmem>>, vector<1x128xf32>
    %21 = vector.broadcast %20 : vector<1x128xf32> to vector<8x128xf32>
    %22 = arith.addf %19, %21 : vector<8x128xf32>
    %cst_17 = arith.constant 0.000000e+00 : f32
    %23 = vector.broadcast %cst_17 : f32 to vector<8x128xf32>
    %24 = arith.maximumf %22, %23 : vector<8x128xf32>
    %25 = arith.truncf %24 : vector<8x128xf32> to vector<8x128xbf16>
    %c0_18 = arith.constant 0 : index
    %c0_19 = arith.constant 0 : index
    %26 = vector.load %arg8[%c0_18, %c0_19] : memref<128x2xbf16, #tpu.memory_space<vmem>>, vector<128x2xbf16>
    %cst_20 = arith.constant dense<0.000000e+00> : vector<8x2xf32>
    %27 = tpu.matmul %25, %26, %cst_20 {dimension_numbers = #tpu.dot_dimension_numbers<[1], [0], [0], [1], [0, 0, 1, 1], [], []>} : vector<8x128xbf16>, vector<128x2xbf16>, vector<8x2xf32> -> vector<8x2xf32>
    %c0_21 = arith.constant 0 : index
    %c0_22 = arith.constant 0 : index
    %28 = vector.load %arg9[%c0_21, %c0_22] : memref<1x2xf32, #tpu.memory_space<vmem>>, vector<1x2xf32>
    %29 = vector.broadcast %28 : vector<1x2xf32> to vector<8x2xf32>
    %30 = arith.addf %27, %29 : vector<8x2xf32>
    %c0_23 = arith.constant 0 : index
    %c0_24 = arith.constant 0 : index
    %31 = vector.load %arg10[%c0_23, %c0_24] : memref<8x2xf32, #tpu.memory_space<vmem>>, vector<8x2xf32>
    tpu.vector_store %arg10[%c0_23, %c0_24], %30 {strides = array<i32>} : memref<8x2xf32, #tpu.memory_space<vmem>>, vector<8x2xf32>,
    return
  }
  func.func @transform_0(%arg0: i32) -> (i32, i32) {
    %c0_i32 = arith.constant 0 : i32
    %c0_i32_0 = arith.constant 0 : i32
    return %arg0, %c0_i32 : i32, i32
  }
  func.func @transform_1(%arg0: i32) -> (i32, i32) {
    %c0_i32 = arith.constant 0 : i32
    %c0_i32_0 = arith.constant 0 : i32
    %c0_i32_1 = arith.constant 0 : i32
    return %c0_i32, %c0_i32_0 : i32, i32
  }
  func.func @transform_2(%arg0: i32) -> (i32, i32) {
    %c0_i32 = arith.constant 0 : i32
    %c0_i32_0 = arith.constant 0 : i32
    %c0_i32_1 = arith.constant 0 : i32
    return %c0_i32, %c0_i32_0 : i32, i32
  }
  func.func @transform_3(%arg0: i32) -> (i32, i32) {
    %c0_i32 = arith.constant 0 : i32
    %c0_i32_0 = arith.constant 0 : i32
    %c0_i32_1 = arith.constant 0 : i32
    return %c0_i32, %c0_i32_0 : i32, i32
  }
  func.func @transform_4(%arg0: i32) -> (i32, i32) {
    %c0_i32 = arith.constant 0 : i32
    %c0_i32_0 = arith.constant 0 : i32
    %c0_i32_1 = arith.constant 0 : i32
    return %c0_i32, %c0_i32_0 : i32, i32
  }
  func.func @transform_5(%arg0: i32) -> (i32, i32) {
    %c0_i32 = arith.constant 0 : i32
    %c0_i32_0 = arith.constant 0 : i32
    %c0_i32_1 = arith.constant 0 : i32
    return %c0_i32, %c0_i32_0 : i32, i32
  }
  func.func @transform_6(%arg0: i32) -> (i32, i32) {
    %c0_i32 = arith.constant 0 : i32
    %c0_i32_0 = arith.constant 0 : i32
    %c0_i32_1 = arith.constant 0 : i32
    return %c0_i32, %c0_i32_0 : i32, i32
  }
  func.func @transform_7(%arg0: i32) -> (i32, i32) {
    %c0_i32 = arith.constant 0 : i32
    %c0_i32_0 = arith.constant 0 : i32
    %c0_i32_1 = arith.constant 0 : i32
    return %c0_i32, %c0_i32_0 : i32, i32
  }
  func.func @transform_8(%arg0: i32) -> (i32, i32) {
    %c0_i32 = arith.constant 0 : i32
    %c0_i32_0 = arith.constant 0 : i32
    %c0_i32_1 = arith.constant 0 : i32
    return %c0_i32, %c0_i32_0 : i32, i32
  }
  func.func @transform_9(%arg0: i32) -> (i32, i32) {
    %c0_i32 = arith.constant 0 : i32
    %c0_i32_0 = arith.constant 0 : i32
    return %arg0, %c0_i32 : i32, i32
  }
}

</mosaic_0001>

<llo_original>
// kernel: ann_model_forward.1
$region0: #{ann_model_forward.1}
  #allocation0 [shape = 'u32[]', space=smem, size = 0x4, offset = 0x4, fixed_abs, tag = 'smem constant byte address 0x4 - core index']
  #allocation1 [shape = 'u32[144,128]{1,0:T(1,128)}', space=vmem, size = 0x12000, scoped, tag = 'internal scratch']
  %s0 = inlined_call_operand.vmem [shape: f32[8,32], index: 0, kind: input, shape index: {}]
  %s1 = inlined_call_operand.hbm [shape: bf16[32,256], index: 1, kind: input, shape index: {}]
  %s2 = inlined_call_operand.vmem [shape: f32[1,256], index: 2, kind: input, shape index: {}]
  %s3 = inlined_call_operand.hbm [shape: bf16[256,128], index: 3, kind: input, shape index: {}]
  %s4 = inlined_call_operand.hbm [shape: f32[1,128], index: 4, kind: input, shape index: {}]
  %s5 = inlined_call_operand.vmem [shape: bf16[128,128], index: 5, kind: input, shape index: {}]
  %s6 = inlined_call_operand.hbm [shape: f32[1,128], index: 6, kind: input, shape index: {}]
  %s7 = inlined_call_operand.vmem [shape: bf16[128,2], index: 7, kind: input, shape index: {}]
  %s8 = inlined_call_operand.vmem [shape: f32[1,2], index: 8, kind: input, shape index: {}]
  %s9 = inlined_call_operand.vmem [shape: f32[8,2], index: 9, kind: output, shape index: {}]
  %s10 = sld [smem:[#allocation0]]
  $region62: #{ann_model_forward.1} parent=0
    _
  %s12 = ssub.s32 1, %s10
  %s13 = scalar_select 0, %s12, %s10
  $region1: #{ann_model_forward.1} parent=0
    #allocation2 [shape = 'u8[16384]{0}', space=vmem, size = 0x4000, scoped, tag = 'input window, operand 1, single buffered']
    #allocation3 [shape = 's32[1]{0}', space=sflag, size = 0x4, scoped, tag = 'scoped memory for ann_model_forward.1']
    #allocation4 [shape = 'u8[65536]{0}', space=vmem, size = 0x10000, scoped, tag = 'input window, operand 3, single buffered']
    #allocation5 [shape = 's32[1]{0}', space=sflag, size = 0x4, scoped, tag = 'scoped memory for ann_model_forward.1']
    #allocation6 [shape = 'u8[512]{0}', space=vmem, size = 0x400, scoped, tag = 'input window, operand 4, single buffered']
    #allocation7 [shape = 'u8[512]{0}', space=vmem, size = 0x400, scoped, tag = 'input window, operand 6, single buffered']
    #allocation8 [shape = 's32[1]{0}', space=sflag, size = 0x4, scoped, tag = 'scoped memory for ann_model_forward.1']
    %14 = vsyncpa [#allocation3], 0
    %15 = vsyncpa [#allocation5], 0
    %16 = vsyncpa [#allocation8], 0
    // Predicated region
    $region2: #{ann_model_forward.1} parent=1 // pred_check
      _
    $region3: #{ann_model_forward.1} parent=1 // pred_check_branch
      %18 = sbr.rel (0) target = $region5
    $region4: #{ann_model_forward.1} parent=1 // pred_region
      _
    $region5: #{ann_model_forward.1} parent=1 // pred_fallthru
      _
    // Predicated region
    $region6: #{ann_model_forward.1} parent=1 // pred_check
      _
    $region7: #{ann_model_forward.1} parent=1 // pred_check_branch
      %20 = sbr.rel (0) target = $region9
    $region8: #{ann_model_forward.1} parent=1 // pred_region
      %s22 = ssub.s32 512, 512
      %23 = vsyncadd [#allocation3], %s22
      %s24 = sshll.u32 [#allocation2], 4
      %s25 = int_to_ptr.vmem [resolvable:$true] %s24
      %30 = dma.hbm_to_vmem [thread:$0]  %s1, 512, %s25, [#allocation3], 128, 128, 8
    $region9: #{ann_model_forward.1} parent=1 // pred_fallthru
      _
    // Predicated region
    $region10: #{ann_model_forward.1} parent=1 // pred_check
      _
    $region11: #{ann_model_forward.1} parent=1 // pred_check_branch
      %32 = sbr.rel (0) target = $region13
    $region12: #{ann_model_forward.1} parent=1 // pred_region
      _
    $region13: #{ann_model_forward.1} parent=1 // pred_fallthru
      _
    // Predicated region
    $region14: #{ann_model_forward.1} parent=1 // pred_check
      _
    $region15: #{ann_model_forward.1} parent=1 // pred_check_branch
      %34 = sbr.rel (0) target = $region17
    $region16: #{ann_model_forward.1} parent=1 // pred_region
      %s36 = ssub.s32 2048, 2048
      %37 = vsyncadd [#allocation5], %s36
      %s38 = sshll.u32 [#allocation4], 4
      %s39 = int_to_ptr.vmem [resolvable:$true] %s38
      %44 = dma.hbm_to_vmem [thread:$0]  %s3, 2048, %s39, [#allocation5], 64, 64, 4
    $region17: #{ann_model_forward.1} parent=1 // pred_fallthru
      _
    // Predicated region
    $region18: #{ann_model_forward.1} parent=1 // pred_check
      _
    $region19: #{ann_model_forward.1} parent=1 // pred_check_branch
      %46 = sbr.rel (0) target = $region21
    $region20: #{ann_model_forward.1} parent=1 // pred_region
      %s48 = ssub.s32 16, 16
      %49 = vsyncadd [#allocation5], %s48
      %s51 = sshll.u32 [#allocation6], 4
      %s52 = int_to_ptr.vmem [resolvable:$true] %s51
      %54 = dma.hbm_to_vmem [thread:$0]  %s4, 16, %s52, [#allocation5]
    $region21: #{ann_model_forward.1} parent=1 // pred_fallthru
      _
    // Predicated region
    $region22: #{ann_model_forward.1} parent=1 // pred_check
      _
    $region23: #{ann_model_forward.1} parent=1 // pred_check_branch
      %56 = sbr.rel (0) target = $region25
    $region24: #{ann_model_forward.1} parent=1 // pred_region
      _
    $region25: #{ann_model_forward.1} parent=1 // pred_fallthru
      _
    // Predicated region
    $region26: #{ann_model_forward.1} parent=1 // pred_check
      _
    $region27: #{ann_model_forward.1} parent=1 // pred_check_branch
      %58 = sbr.rel (0) target = $region29
    $region28: #{ann_model_forward.1} parent=1 // pred_region
      %s60 = ssub.s32 16, 16
      %61 = vsyncadd [#allocation8], %s60
      %s63 = sshll.u32 [#allocation7], 4
      %s64 = int_to_ptr.vmem [resolvable:$true] %s63
      %66 = dma.hbm_to_vmem [thread:$0]  %s6, 16, %s64, [#allocation8]
    $region29: #{ann_model_forward.1} parent=1 // pred_fallthru
      _
    // Predicated region
    $region30: #{ann_model_forward.1} parent=1 // pred_check
      _
    $region31: #{ann_model_forward.1} parent=1 // pred_check_branch
      %68 = sbr.rel (0) target = $region33
    $region32: #{ann_model_forward.1} parent=1 // pred_region
      _
    $region33: #{ann_model_forward.1} parent=1 // pred_fallthru
      _
    // Predicated region
    $region34: #{ann_model_forward.1} parent=1 // pred_check
      _
    $region35: #{ann_model_forward.1} parent=1 // pred_check_branch
      %70 = sbr.rel (0) target = $region37
    $region36: #{ann_model_forward.1} parent=1 // pred_region
      _
    $region37: #{ann_model_forward.1} parent=1 // pred_fallthru
      _
    // Predicated region
    $region38: #{ann_model_forward.1} parent=1 // pred_check
      _
    $region39: #{ann_model_forward.1} parent=1 // pred_check_branch
      %72 = sbr.rel (0) target = $region41
    $region40: #{ann_model_forward.1} parent=1 // pred_region
      %73 = dma.done [#allocation3], 512
    $region41: #{ann_model_forward.1} parent=1 // pred_fallthru
      _
    // Predicated region
    $region42: #{ann_model_forward.1} parent=1 // pred_check
      _
    $region43: #{ann_model_forward.1} parent=1 // pred_check_branch
      %75 = sbr.rel (0) target = $region45
    $region44: #{ann_model_forward.1} parent=1 // pred_region
      %76 = dma.done [#allocation5], 2048
    $region45: #{ann_model_forward.1} parent=1 // pred_fallthru
      _
    // Predicated region
    $region46: #{ann_model_forward.1} parent=1 // pred_check
      _
    $region47: #{ann_model_forward.1} parent=1 // pred_check_branch
      %78 = sbr.rel (0) target = $region49
    $region48: #{ann_model_forward.1} parent=1 // pred_region
      %79 = dma.done [#allocation5], 16
    $region49: #{ann_model_forward.1} parent=1 // pred_fallthru
      _
    // Predicated region
    $region50: #{ann_model_forward.1} parent=1 // pred_check
      _
    $region51: #{ann_model_forward.1} parent=1 // pred_check_branch
      %81 = sbr.rel (0) target = $region53
    $region52: #{ann_model_forward.1} parent=1 // pred_region
      %82 = dma.done [#allocation8], 16
    $region53: #{ann_model_forward.1} parent=1 // pred_fallthru
      _
    %v84 = vld [vmem:[%s0] sm:$0xff]
    %v85 = vpack.c.bf16 %v84, %v84
    %v86 = vld [vmem:[#allocation2] sm:$0xff]
    %v87 = vld [vmem:[#allocation2 + $0x8] sm:$0xff]
    %v88 = vld [vmem:[#allocation2 + $0x10] sm:$0xff]
    %v89 = vld [vmem:[#allocation2 + $0x18] sm:$0xff]
    %v90 = vld [vmem:[%s2] sm:$0x3]
    %v92 = vlaneseq
    %v93 = vshrl.u32 %v92, 7
    %v94 = vsub.s32 0, %v93
    %v95 = vrot.slane %v90, %v94
    %v96 = vlaneseq
    %v97 = vshrl.u32 %v96, 7
    %v98 = vsub.s32 1, %v97
    %v99 = vrot.slane %v90, %v98
    %v106 = vunpack.c.l.b16 %v86
    %v107 = vunpack.c.h.b16 %v86
    %v108 = vunpack.c.l.b16 %v87
    %v109 = vunpack.c.h.b16 %v87
    %v110 = vunpack.c.l.b16 %v88
    %v111 = vunpack.c.h.b16 %v88
    %v112 = vunpack.c.l.b16 %v89
    %v113 = vunpack.c.h.b16 %v89
    %v114 = vpack.c.b16 %v108, %v106
    %v115 = vpack.c.b16 %v109, %v107
    %v116 = vpack.c.b16 %v112, %v110
    %v117 = vpack.c.b16 %v113, %v111
    %vm122 = vcmask 261120
    %v124 = vsel %vm122, %v85, 0
    %126 = vmatprep.subr.bf16.mxu0 0
    %127 = vmatpush1.bf16.msra.mxu0 0
    %128 = vmatprep.subr.bf16.mxu0 0
    %129 = vmatpush1.bf16.msra.mxu0 0
    %130 = vmatprep.subr.bf16.mxu0 0
    %131 = vmatpush1.bf16.msra.mxu0 0
    %132 = vmatprep.subr.bf16.mxu0 0
    %133 = vmatpush1.bf16.msra.mxu0 0
    %134 = vmatprep.subr.bf16.mxu0 0
    %135 = vmatpush1.bf16.msra.mxu0 0
    %136 = vmatprep.subr.bf16.mxu0 0
    %137 = vmatpush1.bf16.msra.mxu0 0
    %138 = vmatprep.subr.bf16.mxu0 %v117
    %139 = vmatpush1.bf16.msra.mxu0 %v116
    %140 = vmatprep.subr.bf16.mxu0 %v115
    %141 = vmatpush1.bf16.msra.mxu0 %v114
    %142 = vmatprep.subr.bf16.mxu0 0
    %143 = vmatpush2.bf16.msra.mxu0 0
    %144 = vmatprep.subr.bf16.mxu0 0
    %145 = vmatpush2.bf16.msra.mxu0 0
    %146 = vmatprep.subr.bf16.mxu0 0
    %147 = vmatpush2.bf16.msra.mxu0 0
    %148 = vmatprep.subr.bf16.mxu0 0
    %149 = vmatpush2.bf16.msra.mxu0 0
    %150 = vmatprep.subr.bf16.mxu0 0
    %151 = vmatpush2.bf16.msra.mxu0 0
    %152 = vmatprep.subr.bf16.mxu0 0
    %153 = vmatpush2.bf16.msra.mxu0 0
    %154 = vmatprep.subr.bf16.mxu0 0
    %155 = vmatpush2.bf16.msra.mxu0 0
    %156 = vmatprep.subr.bf16.mxu0 0
    %157 = vmatpush2.bf16.msra.mxu0 0
    %158 = vmatprep.mubr.bf16.mxu0 0
    %159 = vmatmul.mubr.bf16.gmra.mxu0 %v124
    %v160 = vpop.f32.mrf.mxu0
    %v161 = vadd.f32 %v95, %v160
    %v162 = vpop.f32.mrf.mxu0
    %v163 = vadd.f32 %v99, %v162
    %v164 = vpop.f32.mrf.mxu0
    %v165 = vpop.f32.mrf.mxu0
    %166 = vdwg.mxu0
    %v167 = vmax.f32 %v161, 0.0
    %v168 = vmax.f32 %v163, 0.0
    %v169 = vpack.c.bf16 %v167, %v167
    %v170 = vpack.c.bf16 %v168, %v168
    %v171 = vld [vmem:[#allocation4] sm:$0xf]
    %v172 = vld [vmem:[#allocation4 + $0x4] sm:$0xf]
    %v173 = vld [vmem:[#allocation4 + $0x8] sm:$0xf]
    %v174 = vld [vmem:[#allocation4 + $0xc] sm:$0xf]
    %v175 = vld [vmem:[#allocation4 + $0x10] sm:$0xf]
    %v176 = vld [vmem:[#allocation4 + $0x14] sm:$0xf]
    %v177 = vld [vmem:[#allocation4 + $0x18] sm:$0xf]
    %v178 = vld [vmem:[#allocation4 + $0x1c] sm:$0xf]
    %v179 = vld [vmem:[#allocation4 + $0x20] sm:$0xf]
    %v180 = vld [vmem:[#allocation4 + $0x24] sm:$0xf]
    %v181 = vld [vmem:[#allocation4 + $0x28] sm:$0xf]
    %v182 = vld [vmem:[#allocation4 + $0x2c] sm:$0xf]
    %v183 = vld [vmem:[#allocation4 + $0x30] sm:$0xf]
    %v184 = vld [vmem:[#allocation4 + $0x34] sm:$0xf]
    %v185 = vld [vmem:[#allocation4 + $0x38] sm:$0xf]
    %v186 = vld [vmem:[#allocation4 + $0x3c] sm:$0xf]
    %v187 = vld [vmem:[#allocation4 + $0x40] sm:$0xf]
    %v188 = vld [vmem:[#allocation4 + $0x44] sm:$0xf]
    %v189 = vld [vmem:[#allocation4 + $0x48] sm:$0xf]
    %v190 = vld [vmem:[#allocation4 + $0x4c] sm:$0xf]
    %v191 = vld [vmem:[#allocation4 + $0x50] sm:$0xf]
    %v192 = vld [vmem:[#allocation4 + $0x54] sm:$0xf]
    %v193 = vld [vmem:[#allocation4 + $0x58] sm:$0xf]
    %v194 = vld [vmem:[#allocation4 + $0x5c] sm:$0xf]
    %v195 = vld [vmem:[#allocation4 + $0x60] sm:$0xf]
    %v196 = vld [vmem:[#allocation4 + $0x64] sm:$0xf]
    %v197 = vld [vmem:[#allocation4 + $0x68] sm:$0xf]
    %v198 = vld [vmem:[#allocation4 + $0x6c] sm:$0xf]
    %v199 = vld [vmem:[#allocation4 + $0x70] sm:$0xf]
    %v200 = vld [vmem:[#allocation4 + $0x74] sm:$0xf]
    %v201 = vld [vmem:[#allocation4 + $0x78] sm:$0xf]
    %v202 = vld [vmem:[#allocation4 + $0x7c] sm:$0xf]
    %v203 = vld [vmem:[#allocation6] sm:$0x1]
    %v205 = vlaneseq
    %v206 = vshrl.u32 %v205, 7
    %v207 = vsub.s32 0, %v206
    %v208 = vrot.slane %v203, %v207
    %v242 = vunpack.c.l.b16 %v171
    %v243 = vunpack.c.l.b16 %v172
    %v244 = vunpack.c.l.b16 %v173
    %v245 = vunpack.c.l.b16 %v174
    %v246 = vunpack.c.l.b16 %v175
    %v247 = vunpack.c.l.b16 %v176
    %v248 = vunpack.c.l.b16 %v177
    %v249 = vunpack.c.l.b16 %v178
    %v250 = vunpack.c.l.b16 %v179
    %v251 = vunpack.c.l.b16 %v180
    %v252 = vunpack.c.l.b16 %v181
    %v253 = vunpack.c.l.b16 %v182
    %v254 = vunpack.c.l.b16 %v183
    %v255 = vunpack.c.l.b16 %v184
    %v256 = vunpack.c.l.b16 %v185
    %v257 = vunpack.c.l.b16 %v186
    %v258 = vunpack.c.l.b16 %v187
    %v259 = vunpack.c.l.b16 %v188
    %v260 = vunpack.c.l.b16 %v189
    %v261 = vunpack.c.l.b16 %v190
    %v262 = vunpack.c.l.b16 %v191
    %v263 = vunpack.c.l.b16 %v192
    %v264 = vunpack.c.l.b16 %v193
    %v265 = vunpack.c.l.b16 %v194
    %v266 = vunpack.c.l.b16 %v195
    %v267 = vunpack.c.l.b16 %v196
    %v268 = vunpack.c.l.b16 %v197
    %v269 = vunpack.c.l.b16 %v198
    %v270 = vunpack.c.l.b16 %v199
    %v271 = vunpack.c.l.b16 %v200
    %v272 = vunpack.c.l.b16 %v201
    %v273 = vunpack.c.l.b16 %v202
    %v274 = vpack.c.b16 %v243, %v242
    %v275 = vpack.c.b16 %v245, %v244
    %v276 = vpack.c.b16 %v247, %v246
    %v277 = vpack.c.b16 %v249, %v248
    %v278 = vpack.c.b16 %v251, %v250
    %v279 = vpack.c.b16 %v253, %v252
    %v280 = vpack.c.b16 %v255, %v254
    %v281 = vpack.c.b16 %v257, %v256
    %v282 = vpack.c.b16 %v259, %v258
    %v283 = vpack.c.b16 %v261, %v260
    %v284 = vpack.c.b16 %v263, %v262
    %v285 = vpack.c.b16 %v265, %v264
    %v286 = vpack.c.b16 %v267, %v266
    %v287 = vpack.c.b16 %v269, %v268
    %v288 = vpack.c.b16 %v271, %v270
    %v289 = vpack.c.b16 %v273, %v272
    %306 = vmatprep.subr.bf16.mxu0 0
    %307 = vmatpush1.bf16.msra.mxu0 %v281
    %308 = vmatprep.subr.bf16.mxu0 0
    %309 = vmatpush1.bf16.msra.mxu0 %v280
    %310 = vmatprep.subr.bf16.mxu0 0
    %311 = vmatpush1.bf16.msra.mxu0 %v279
    %312 = vmatprep.subr.bf16.mxu0 0
    %313 = vmatpush1.bf16.msra.mxu0 %v278
    %314 = vmatprep.subr.bf16.mxu0 0
    %315 = vmatpush1.bf16.msra.mxu0 %v277
    %316 = vmatprep.subr.bf16.mxu0 0
    %317 = vmatpush1.bf16.msra.mxu0 %v276
    %318 = vmatprep.subr.bf16.mxu0 0
    %319 = vmatpush1.bf16.msra.mxu0 %v275
    %320 = vmatprep.subr.bf16.mxu0 0
    %321 = vmatpush1.bf16.msra.mxu0 %v274
    %322 = vmatprep.subr.bf16.mxu0 0
    %323 = vmatpush2.bf16.msra.mxu0 %v289
    %324 = vmatprep.subr.bf16.mxu0 0
    %325 = vmatpush2.bf16.msra.mxu0 %v288
    %326 = vmatprep.subr.bf16.mxu0 0
    %327 = vmatpush2.bf16.msra.mxu0 %v287
    %328 = vmatprep.subr.bf16.mxu0 0
    %329 = vmatpush2.bf16.msra.mxu0 %v286
    %330 = vmatprep.subr.bf16.mxu0 0
    %331 = vmatpush2.bf16.msra.mxu0 %v285
    %332 = vmatprep.subr.bf16.mxu0 0
    %333 = vmatpush2.bf16.msra.mxu0 %v284
    %334 = vmatprep.subr.bf16.mxu0 0
    %335 = vmatpush2.bf16.msra.mxu0 %v283
    %336 = vmatprep.subr.bf16.mxu0 0
    %337 = vmatpush2.bf16.msra.mxu0 %v282
    %338 = vmatprep.mubr.bf16.mxu0 %v170
    %339 = vmatmul.mubr.bf16.gmra.mxu0 %v169
    %v340 = vpop.f32.mrf.mxu0
    %v341 = vadd.f32 %v208, %v340
    %v342 = vpop.f32.mrf.mxu0
    %v343 = vpop.f32.mrf.mxu0
    %v344 = vpop.f32.mrf.mxu0
    %345 = vdwg.mxu0
    %v346 = vmax.f32 %v341, 0.0
    %v347 = vpack.c.bf16 %v346, %v346
    %v348 = vld [vmem:[%s5] sm:$0xf]
    %v349 = vld [vmem:[%s5 + $0x4] sm:$0xf]
    %v350 = vld [vmem:[%s5 + $0x8] sm:$0xf]
    %v351 = vld [vmem:[%s5 + $0xc] sm:$0xf]
    %v352 = vld [vmem:[%s5 + $0x10] sm:$0xf]
    %v353 = vld [vmem:[%s5 + $0x14] sm:$0xf]
    %v354 = vld [vmem:[%s5 + $0x18] sm:$0xf]
    %v355 = vld [vmem:[%s5 + $0x1c] sm:$0xf]
    %v356 = vld [vmem:[%s5 + $0x20] sm:$0xf]
    %v357 = vld [vmem:[%s5 + $0x24] sm:$0xf]
    %v358 = vld [vmem:[%s5 + $0x28] sm:$0xf]
    %v359 = vld [vmem:[%s5 + $0x2c] sm:$0xf]
    %v360 = vld [vmem:[%s5 + $0x30] sm:$0xf]
    %v361 = vld [vmem:[%s5 + $0x34] sm:$0xf]
    %v362 = vld [vmem:[%s5 + $0x38] sm:$0xf]
    %v363 = vld [vmem:[%s5 + $0x3c] sm:$0xf]
    %v364 = vld [vmem:[#allocation7] sm:$0x1]
    %v366 = vlaneseq
    %v367 = vshrl.u32 %v366, 7
    %v368 = vsub.s32 0, %v367
    %v369 = vrot.slane %v364, %v368
    %v387 = vunpack.c.l.b16 %v348
    %v388 = vunpack.c.l.b16 %v349
    %v389 = vunpack.c.l.b16 %v350
    %v390 = vunpack.c.l.b16 %v351
    %v391 = vunpack.c.l.b16 %v352
    %v392 = vunpack.c.l.b16 %v353
    %v393 = vunpack.c.l.b16 %v354
    %v394 = vunpack.c.l.b16 %v355
    %v395 = vunpack.c.l.b16 %v356
    %v396 = vunpack.c.l.b16 %v357
    %v397 = vunpack.c.l.b16 %v358
    %v398 = vunpack.c.l.b16 %v359
    %v399 = vunpack.c.l.b16 %v360
    %v400 = vunpack.c.l.b16 %v361
    %v401 = vunpack.c.l.b16 %v362
    %v402 = vunpack.c.l.b16 %v363
    %v403 = vpack.c.b16 %v388, %v387
    %v404 = vpack.c.b16 %v390, %v389
    %v405 = vpack.c.b16 %v392, %v391
    %v406 = vpack.c.b16 %v394, %v393
    %v407 = vpack.c.b16 %v396, %v395
    %v408 = vpack.c.b16 %v398, %v397
    %v409 = vpack.c.b16 %v400, %v399
    %v410 = vpack.c.b16 %v402, %v401
    %419 = vmatprep.subr.bf16.mxu0 0
    %420 = vmatpush1.bf16.msra.mxu0 %v410
    %421 = vmatprep.subr.bf16.mxu0 0
    %422 = vmatpush1.bf16.msra.mxu0 %v409
    %423 = vmatprep.subr.bf16.mxu0 0
    %424 = vmatpush1.bf16.msra.mxu0 %v408
    %425 = vmatprep.subr.bf16.mxu0 0
    %426 = vmatpush1.bf16.msra.mxu0 %v407
    %427 = vmatprep.subr.bf16.mxu0 0
    %428 = vmatpush1.bf16.msra.mxu0 %v406
    %429 = vmatprep.subr.bf16.mxu0 0
    %430 = vmatpush1.bf16.msra.mxu0 %v405
    %431 = vmatprep.subr.bf16.mxu0 0
    %432 = vmatpush1.bf16.msra.mxu0 %v404
    %433 = vmatprep.subr.bf16.mxu0 0
    %434 = vmatpush1.bf16.msra.mxu0 %v403
    %435 = vmatprep.subr.bf16.mxu0 0
    %436 = vmatpush2.bf16.msra.mxu0 0
    %437 = vmatprep.subr.bf16.mxu0 0
    %438 = vmatpush2.bf16.msra.mxu0 0
    %439 = vmatprep.subr.bf16.mxu0 0
    %440 = vmatpush2.bf16.msra.mxu0 0
    %441 = vmatprep.subr.bf16.mxu0 0
    %442 = vmatpush2.bf16.msra.mxu0 0
    %443 = vmatprep.subr.bf16.mxu0 0
    %444 = vmatpush2.bf16.msra.mxu0 0
    %445 = vmatprep.subr.bf16.mxu0 0
    %446 = vmatpush2.bf16.msra.mxu0 0
    %447 = vmatprep.subr.bf16.mxu0 0
    %448 = vmatpush2.bf16.msra.mxu0 0
    %449 = vmatprep.subr.bf16.mxu0 0
    %450 = vmatpush2.bf16.msra.mxu0 0
    %451 = vmatprep.mubr.bf16.mxu0 0
    %452 = vmatmul.mubr.bf16.gmra.mxu0 %v347
    %v453 = vpop.f32.mrf.mxu0
    %v454 = vadd.f32 %v369, %v453
    %v455 = vpop.f32.mrf.mxu0
    %v456 = vpop.f32.mrf.mxu0
    %v457 = vpop.f32.mrf.mxu0
    %458 = vdwg.mxu0
    %v459 = vmax.f32 %v454, 0.0
    %v460 = vpack.c.bf16 %v459, %v459
    %v461 = vld [vmem:[%s7] sm:$0xf]
    %v462 = vld [vmem:[%s7 + $0x4] sm:$0xf]
    %v463 = vld [vmem:[%s7 + $0x8] sm:$0xf]
    %v464 = vld [vmem:[%s7 + $0xc] sm:$0xf]
    %v465 = vld [vmem:[%s7 + $0x10] sm:$0xf]
    %v466 = vld [vmem:[%s7 + $0x14] sm:$0xf]
    %v467 = vld [vmem:[%s7 + $0x18] sm:$0xf]
    %v468 = vld [vmem:[%s7 + $0x1c] sm:$0xf]
    %v469 = vld [vmem:[%s7 + $0x20] sm:$0xf]
    %v470 = vld [vmem:[%s7 + $0x24] sm:$0xf]
    %v471 = vld [vmem:[%s7 + $0x28] sm:$0xf]
    %v472 = vld [vmem:[%s7 + $0x2c] sm:$0xf]
    %v473 = vld [vmem:[%s7 + $0x30] sm:$0xf]
    %v474 = vld [vmem:[%s7 + $0x34] sm:$0xf]
    %v475 = vld [vmem:[%s7 + $0x38] sm:$0xf]
    %v476 = vld [vmem:[%s7 + $0x3c] sm:$0xf]
    %v477 = vld [vmem:[%s8] sm:$0x1]
    %v479 = vlaneseq
    %v480 = vshrl.u32 %v479, 7
    %v481 = vsub.s32 0, %v480
    %v482 = vrot.slane %v477, %v481
    %v500 = vunpack.c.l.b16 %v461
    %v501 = vunpack.c.l.b16 %v462
    %v502 = vunpack.c.l.b16 %v463
    %v503 = vunpack.c.l.b16 %v464
    %v504 = vunpack.c.l.b16 %v465
    %v505 = vunpack.c.l.b16 %v466
    %v506 = vunpack.c.l.b16 %v467
    %v507 = vunpack.c.l.b16 %v468
    %v508 = vunpack.c.l.b16 %v469
    %v509 = vunpack.c.l.b16 %v470
    %v510 = vunpack.c.l.b16 %v471
    %v511 = vunpack.c.l.b16 %v472
    %v512 = vunpack.c.l.b16 %v473
    %v513 = vunpack.c.l.b16 %v474
    %v514 = vunpack.c.l.b16 %v475
    %v515 = vunpack.c.l.b16 %v476
    %v516 = vpack.c.b16 %v501, %v500
    %v517 = vpack.c.b16 %v503, %v502
    %v518 = vpack.c.b16 %v505, %v504
    %v519 = vpack.c.b16 %v507, %v506
    %v520 = vpack.c.b16 %v509, %v508
    %v521 = vpack.c.b16 %v511, %v510
    %v522 = vpack.c.b16 %v513, %v512
    %v523 = vpack.c.b16 %v515, %v514
    %532 = vmatprep.subr.bf16.mxu0 0
    %533 = vmatpush1.bf16.msra.mxu0 %v523
    %534 = vmatprep.subr.bf16.mxu0 0
    %535 = vmatpush1.bf16.msra.mxu0 %v522
    %536 = vmatprep.subr.bf16.mxu0 0
    %537 = vmatpush1.bf16.msra.mxu0 %v521
    %538 = vmatprep.subr.bf16.mxu0 0
    %539 = vmatpush1.bf16.msra.mxu0 %v520
    %540 = vmatprep.subr.bf16.mxu0 0
    %541 = vmatpush1.bf16.msra.mxu0 %v519
    %542 = vmatprep.subr.bf16.mxu0 0
    %543 = vmatpush1.bf16.msra.mxu0 %v518
    %544 = vmatprep.subr.bf16.mxu0 0
    %545 = vmatpush1.bf16.msra.mxu0 %v517
    %546 = vmatprep.subr.bf16.mxu0 0
    %547 = vmatpush1.bf16.msra.mxu0 %v516
    %548 = vmatprep.subr.bf16.mxu0 0
    %549 = vmatpush2.bf16.msra.mxu0 0
    %550 = vmatprep.subr.bf16.mxu0 0
    %551 = vmatpush2.bf16.msra.mxu0 0
    %552 = vmatprep.subr.bf16.mxu0 0
    %553 = vmatpush2.bf16.msra.mxu0 0
    %554 = vmatprep.subr.bf16.mxu0 0
    %555 = vmatpush2.bf16.msra.mxu0 0
    %556 = vmatprep.subr.bf16.mxu0 0
    %557 = vmatpush2.bf16.msra.mxu0 0
    %558 = vmatprep.subr.bf16.mxu0 0
    %559 = vmatpush2.bf16.msra.mxu0 0
    %560 = vmatprep.subr.bf16.mxu0 0
    %561 = vmatpush2.bf16.msra.mxu0 0
    %562 = vmatprep.subr.bf16.mxu0 0
    %563 = vmatpush2.bf16.msra.mxu0 0
    %564 = vmatprep.mubr.bf16.mxu0 0
    %565 = vmatmul.mubr.bf16.gmra.mxu0 %v460
    %v566 = vpop.f32.mrf.mxu0
    %v567 = vadd.f32 %v482, %v566
    %v568 = vpop.f32.mrf.mxu0
    %v569 = vpop.f32.mrf.mxu0
    %v570 = vpop.f32.mrf.mxu0
    %571 = vdwg.mxu0
    %vm572 = vcmask 15360
    %573 = vst.msk [vmem:[%s9] sm:$0xff] %vm572, %v567
    // Predicated region
    $region54: #{ann_model_forward.1} parent=1 // pred_check
      _
    $region55: #{ann_model_forward.1} parent=1 // pred_check_branch
      %575 = sbr.rel (0) target = $region57
    $region56: #{ann_model_forward.1} parent=1 // pred_region
      _
    $region57: #{ann_model_forward.1} parent=1 // pred_fallthru
      _
    // Predicated region
    $region58: #{ann_model_forward.1} parent=1 // pred_check
      _
    $region59: #{ann_model_forward.1} parent=1 // pred_check_branch
      %577 = sbr.rel (0) target = $region61
    $region60: #{ann_model_forward.1} parent=1 // pred_region
      _
    $region61: #{ann_model_forward.1} parent=1 // pred_fallthru
      _
    %578 = vsyncpa [#allocation3], 1
    %579 = vsyncpa [#allocation5], 1
    %580 = vsyncpa [#allocation8], 1

</llo_original>
